<compile_context>
chip_gen: v6e
topology: v6e:2x2x1
jax: 0.10.0
libtpu: 0.0.40
codegen_flags: <defaults>
</compile_context>

<pallas_src>
import functools
import math

import jax
import jax.numpy as jnp
from jax import lax
from jax.experimental import pallas as pl
from jax.experimental.pallas import tpu as pltpu


def _round_up(x: int, m: int) -> int:
    return ((x + m - 1) // m) * m


def _pick_tile(dim: int, align: int, preferred: int) -> int:
    """Pick a tile size for `dim`.

    - If the whole dim fits in one preferred-sized block, use the full extent
      (a full-extent block needs no (8,128) alignment and no padding).
    - Otherwise pick the largest multiple of `align` <= preferred that divides
      the align-rounded dim, so wrapper padding is at most `align - 1`.
    """
    if dim <= preferred:
        return dim
    padded = _round_up(dim, align)
    t = (preferred // align) * align
    while t > align:
        if padded % t == 0:
            return t
        t -= align
    return align


# -----------------------------------------------------------------------------
# Fused forward + penalty-partial kernel.
#   y      = x @ W.T                                  (MXU, f32 accumulate)
#   p[j,k] = sum over the tn rows of W tile (j,k) of W^2, per column (VPU)
# The per-(j-slab, column) partials are combined (sum over j, sqrt, mean) in
# plain JAX -- that part is O(in_features) and not worth a kernel.
# -----------------------------------------------------------------------------
def _fused_kernel(x_ref, w_ref, o_ref, p_ref, acc_ref, *, compute_dtype):
    k = pl.program_id(2)

    @pl.when(k == 0)
    def _():
        acc_ref[...] = jnp.zeros_like(acc_ref)

    xb = x_ref[...]
    wb = w_ref[...]
    cd = compute_dtype if compute_dtype is not None else xb.dtype

    # x block (tm, tk), w block (tn, tk): contract last axes -> (tm, tn).
    # (Same "nt" contraction pattern as the flash-attention reference kernel;
    # no extra weight transpose in HBM or VMEM.)
    acc_ref[...] += lax.dot_general(
        xb.astype(cd),
        wb.astype(cd),
        dimension_numbers=(((1,), (1,)), ((), ())),
        preferred_element_type=jnp.float32,
    )

    # Fused penalty partial (independent of i, so it is simply rewritten with
    # the identical value on every i pass -- cheap VPU work riding under the
    # MXU/DMA-bound matmul).  Written unconditionally so the output block is
    # always valid when the pipeline writes it back.
    wf = wb.astype(jnp.float32)
    p_ref[...] = jnp.sum(wf * wf, axis=0)[None, None, :]

    @pl.when(k == pl.num_programs(2) - 1)
    def _():
        o_ref[...] = acc_ref[...].astype(o_ref.dtype)


@functools.partial(jax.jit, static_argnames=("tm", "tn", "tk", "compute_dtype"))
def row_norm_penalized_linear_forward_and_penalty(
    x, weight, *, tm=None, tn=256, tk=2048, compute_dtype=jnp.bfloat16
):
    """Returns (y, penalty) with y = x @ W.T and penalty = mean_j(||W[:,j]||-1)^2."""
    batch, in_features = x.shape
    out_features, in_features_w = weight.shape
    assert in_features == in_features_w

    # Tile selection.
    #  - tm covers the full batch when it fits (<= 1024 rows): the weight is
    #    then read from HBM exactly once (single i step).
    #  - tn stays at 256 by default so N//tn >= 2 for typical out_features,
    #    keeping >=2 parallel grid points for v7x's two TensorCores.
    #  - tk is large (2048) to minimise f32 accumulator read-modify-writes and
    #    per-grid-step overhead.
    if tm is None:
        tm = _round_up(batch, 8) if batch <= 1024 else 512
    tm = _pick_tile(batch, 8, tm)
    tn = _pick_tile(out_features, 128, tn)
    tk = _pick_tile(in_features, 128, tk)

    M = _round_up(batch, tm)
    N = _round_up(out_features, tn)
    K = _round_up(in_features, tk)
    grid_m, grid_n, grid_k = M // tm, N // tn, K // tk

    # Padding is a no-op in the common case (full-extent or divisor tiles).
    x_p = x if (M == batch and K == in_features) else jnp.pad(
        x, ((0, M - batch), (0, K - in_features)))
    w_p = weight if (N == out_features and K == in_features) else jnp.pad(
        weight, ((0, N - out_features), (0, K - in_features)))

    x_bytes = jnp.dtype(x.dtype).itemsize
    w_bytes = jnp.dtype(weight.dtype).itemsize
    # Double-buffered inputs/outputs + f32 accumulator, with margin; capped so
    # it also fits v7x's 64 MiB physical VMEM.
    vmem_est = (2 * (tm * tk * x_bytes + tn * tk * w_bytes
                     + tm * tn * x_bytes + tk * 4)
                + tm * tn * 4)
    vmem_limit = int(min(max(vmem_est * 1.5, 32 * 1024 * 1024), 56 * 1024 * 1024))

    cost = pl.CostEstimate(
        flops=2 * M * N * K + 2 * N * K,
        transcendentals=0,
        bytes_accessed=(M * K * x_bytes + N * K * w_bytes
                        + M * N * x_bytes + grid_n * K * 4),
    )

    y_pad, p_part = pl.pallas_call(
        functools.partial(_fused_kernel, compute_dtype=compute_dtype),
        out_shape=(
            jax.ShapeDtypeStruct((M, N), x.dtype),
            jax.ShapeDtypeStruct((grid_n, 1, K), jnp.float32),
        ),
        grid=(grid_m, grid_n, grid_k),
        in_specs=[
            pl.BlockSpec((tm, tk), lambda i, j, k: (i, k)),
            pl.BlockSpec((tn, tk), lambda i, j, k: (j, k)),
        ],
        out_specs=(
            pl.BlockSpec((tm, tn), lambda i, j, k: (i, j)),
            pl.BlockSpec((1, 1, tk), lambda i, j, k: (j, 0, k)),
        ),
        scratch_shapes=[pltpu.VMEM((tm, tn), jnp.float32)],
        compiler_params=pltpu.CompilerParams(
            dimension_semantics=("parallel", "parallel", "arbitrary"),
            vmem_limit_bytes=vmem_limit,
        ),
        cost_estimate=cost,
    )(x_p, w_p)

    y = y_pad if (M == batch and N == out_features) else y_pad[:batch, :out_features]

    # Finish the penalty: sum partials over the out_features slabs, take
    # per-column norms, mean over the real columns (padded zero-columns would
    # each contribute (0-1)^2 = 1, so slice them off; divisor = in_features).
    ss = jnp.sum(p_part[:, 0, :], axis=0)[:in_features]
    penalty = jnp.sum((jnp.sqrt(ss) - 1.0) ** 2) / in_features
    return y, penalty


def row_norm_penalized_linear_forward(x, weight, **kwargs):
    """Module.forward(): y = x @ W.T (no bias)."""
    return row_norm_penalized_linear_forward_and_penalty(x, weight, **kwargs)[0]


# -----------------------------------------------------------------------------
# Standalone penalty kernel (pure HBM streaming reduction over rows of W),
# kept for when the forward is not being run.  Blocks enlarged to ~4 MiB so
# the fixed per-grid-step overhead is amortised against the DMA stream.
# -----------------------------------------------------------------------------
def _penalty_kernel(w_ref, o_ref, ss_ref):
    r = pl.program_id(1)

    @pl.when(r == 0)
    def _():
        ss_ref[...] = jnp.zeros_like(ss_ref)

    w = w_ref[...].astype(jnp.float32)                     # (tr, tc)
    ss_ref[...] += jnp.sum(w * w, axis=0, keepdims=True)   # (1, tc)

    @pl.when(r == pl.num_programs(1) - 1)
    def _():
        d = jnp.sqrt(ss_ref[...]) - 1.0
        o_ref[...] = d * d


@functools.partial(jax.jit, static_argnames=("tr", "tc"))
def row_norm_penalty(weight, *, tr=512, tc=2048):
    out_features, in_features = weight.shape

    tr = _pick_tile(out_features, 8, tr)
    tc = _pick_tile(in_features, 128, tc)
    R = _round_up(out_features, tr)
    C = _round_up(in_features, tc)

    w_p = weight if (R == out_features and C == in_features) else jnp.pad(
        weight, ((0, R - out_features), (0, C - in_features)))

    w_bytes = jnp.dtype(weight.dtype).itemsize
    vmem_limit = int(min(max(2 * tr * tc * w_bytes * 1.5, 32 * 1024 * 1024),
                         56 * 1024 * 1024))

    per_col = pl.pallas_call(
        _penalty_kernel,
        out_shape=jax.ShapeDtypeStruct((1, C), jnp.float32),
        grid=(C // tc, R // tr),
        in_specs=[pl.BlockSpec((tr, tc), lambda j, r: (r, j))],
        out_specs=pl.BlockSpec((1, tc), lambda j, r: (0, j)),
        scratch_shapes=[pltpu.VMEM((1, tc), jnp.float32)],
        compiler_params=pltpu.CompilerParams(
            dimension_semantics=("parallel", "arbitrary"),
            vmem_limit_bytes=vmem_limit,
        ),
    )(w_p)

    # Padded columns (||col|| = 0) are sliced off before the mean.
    return jnp.sum(per_col[0, :in_features]) / in_features


if __name__ == "__main__":
    key = jax.random.PRNGKey(0)
    k_x, k_w = jax.random.split(key)

    batch = 8
    in_features = 32
    out_features = 64

    # nn.Linear-style init: uniform in [-1/sqrt(in_features), 1/sqrt(in_features)].
    bound = 1.0 / math.sqrt(in_features)
    weight = jax.random.uniform(
        k_w, (out_features, in_features), dtype=jnp.float32,
        minval=-bound, maxval=bound,
    )
    x = jax.random.normal(k_x, (batch, in_features), dtype=jnp.float32)

    y, pen_fused = row_norm_penalized_linear_forward_and_penalty(x, weight)
    y = jax.block_until_ready(y)
    pen_fused = jax.block_until_ready(pen_fused)
    pen_standalone = jax.block_until_ready(row_norm_penalty(weight))

    # Plain-JAX references.
    y_ref = x @ weight.T
    pen_ref = jnp.mean((jnp.linalg.norm(weight, axis=-2) - 1.0) ** 2)

    assert y.shape == (batch, out_features)
    # bf16 MXU operands -> relaxed forward tolerance; penalty math stays f32.
    assert jnp.allclose(y, y_ref, atol=2e-2, rtol=2e-2), float(
        jnp.max(jnp.abs(y - y_ref)))
    assert jnp.allclose(pen_fused, pen_ref, atol=1e-5, rtol=1e-5)
    assert jnp.allclose(pen_standalone, pen_ref, atol=1e-5, rtol=1e-5)

    print("KERNEL_OK")
</pallas_src>

<mosaic_0001>
module attributes {stable_mosaic.version = 11 : i64} {
  func.func @_fused_kernel(%arg0: i32, %arg1: i32, %arg2: i32, %arg3: memref<8x32xf32, #tpu.memory_space<vmem>>, %arg4: memref<64x32xf32, #tpu.memory_space<vmem>>, %arg5: memref<8x64xf32, #tpu.memory_space<vmem>>, %arg6: memref<1x1x32xf32, #tpu.memory_space<vmem>>, %arg7: memref<8x64xf32, #tpu.memory_space<vmem>>) attributes {dimension_semantics = [#tpu.dimension_semantics<parallel>, #tpu.dimension_semantics<parallel>, #tpu.dimension_semantics<arbitrary>], iteration_bounds = array<i64: 1, 1, 1>, scalar_prefetch = 0 : i64, scratch_operands = 1 : i64, tpu.core_type = #tpu.core_type<tc>, window_params = [{transform_indices = @transform_0, window_bounds = array<i64: 8, 32>}, {transform_indices = @transform_1, window_bounds = array<i64: 64, 32>}, {transform_indices = @transform_2, window_bounds = array<i64: 8, 64>}, {transform_indices = @transform_3, window_bounds = array<i64: 1, 1, 32>}]} {
    %c0_i32 = arith.constant 0 : i32
    %0 = arith.cmpi eq, %arg2, %c0_i32 : i32
    %1 = arith.extui %0 : i1 to i32
    %c0_i32_0 = arith.constant 0 : i32
    %2 = arith.cmpi ne, %1, %c0_i32_0 : i32
    scf.if %2 {
      %cst_14 = arith.constant 0.000000e+00 : f32
      %18 = vector.broadcast %cst_14 : f32 to vector<8x64xf32>
      %c0_15 = arith.constant 0 : index
      %c0_16 = arith.constant 0 : index
      %19 = vector.load %arg7[%c0_15, %c0_16] : memref<8x64xf32, #tpu.memory_space<vmem>>, vector<8x64xf32>
      tpu.vector_store %arg7[%c0_15, %c0_16], %18 {strides = array<i32>} : memref<8x64xf32, #tpu.memory_space<vmem>>, vector<8x64xf32>,
    } else {
    }
    %c0 = arith.constant 0 : index
    %c0_1 = arith.constant 0 : index
    %3 = vector.load %arg3[%c0, %c0_1] : memref<8x32xf32, #tpu.memory_space<vmem>>, vector<8x32xf32>
    %c0_2 = arith.constant 0 : index
    %c0_3 = arith.constant 0 : index
    %4 = vector.load %arg4[%c0_2, %c0_3] : memref<64x32xf32, #tpu.memory_space<vmem>>, vector<64x32xf32>
    %c0_4 = arith.constant 0 : index
    %c0_5 = arith.constant 0 : index
    %5 = vector.load %arg7[%c0_4, %c0_5] : memref<8x64xf32, #tpu.memory_space<vmem>>, vector<8x64xf32>
    %6 = arith.truncf %3 : vector<8x32xf32> to vector<8x32xbf16>
    %7 = arith.truncf %4 : vector<64x32xf32> to vector<64x32xbf16>
    %cst = arith.constant dense<0.000000e+00> : vector<8x64xf32>
    %8 = tpu.matmul %6, %7, %cst {dimension_numbers = #tpu.dot_dimension_numbers<[1], [1], [0], [0], [0, 0, 1, 0], [], []>} : vector<8x32xbf16>, vector<64x32xbf16>, vector<8x64xf32> -> vector<8x64xf32>
    %9 = arith.addf %5, %8 : vector<8x64xf32>
    %c0_6 = arith.constant 0 : index
    %c0_7 = arith.constant 0 : index
    %10 = vector.load %arg7[%c0_6, %c0_7] : memref<8x64xf32, #tpu.memory_space<vmem>>, vector<8x64xf32>
    tpu.vector_store %arg7[%c0_6, %c0_7], %9 {strides = array<i32>} : memref<8x64xf32, #tpu.memory_space<vmem>>, vector<8x64xf32>,
    %11 = arith.mulf %4, %4 : vector<64x32xf32>
    %cst_8 = arith.constant dense<0.000000e+00> : vector<32xf32>
    %12 = vector.multi_reduction <add>, %11, %cst_8 [0] : vector<64x32xf32> to vector<32xf32>
    %13 = vector.shape_cast %12 : vector<32xf32> to vector<1x1x32xf32>
    %c0_9 = arith.constant 0 : index
    %c0_10 = arith.constant 0 : index
    %c0_11 = arith.constant 0 : index
    %14 = vector.load %arg6[%c0_9, %c0_10, %c0_11] : memref<1x1x32xf32, #tpu.memory_space<vmem>>, vector<1x1x32xf32>
    tpu.vector_store %arg6[%c0_9, %c0_10, %c0_11], %13 {strides = array<i32>} : memref<1x1x32xf32, #tpu.memory_space<vmem>>, vector<1x1x32xf32>,
    %c0_i32_12 = arith.constant 0 : i32
    %15 = arith.cmpi eq, %arg2, %c0_i32_12 : i32
    %16 = arith.extui %15 : i1 to i32
    %c0_i32_13 = arith.constant 0 : i32
    %17 = arith.cmpi ne, %16, %c0_i32_13 : i32
    scf.if %17 {
      %c0_14 = arith.constant 0 : index
      %c0_15 = arith.constant 0 : index
      %18 = vector.load %arg7[%c0_14, %c0_15] : memref<8x64xf32, #tpu.memory_space<vmem>>, vector<8x64xf32>
      %c0_16 = arith.constant 0 : index
      %c0_17 = arith.constant 0 : index
      %19 = vector.load %arg5[%c0_16, %c0_17] : memref<8x64xf32, #tpu.memory_space<vmem>>, vector<8x64xf32>
      tpu.vector_store %arg5[%c0_16, %c0_17], %18 {strides = array<i32>} : memref<8x64xf32, #tpu.memory_space<vmem>>, vector<8x64xf32>,
    } else {
    }
    return
  }
  func.func @transform_0(%arg0: i32, %arg1: i32, %arg2: i32) -> (i32, i32) {
    %c0_i32 = arith.constant 0 : i32
    return %arg0, %arg2 : i32, i32
  }
  func.func @transform_1(%arg0: i32, %arg1: i32, %arg2: i32) -> (i32, i32) {
    %c0_i32 = arith.constant 0 : i32
    return %arg1, %arg2 : i32, i32
  }
  func.func @transform_2(%arg0: i32, %arg1: i32, %arg2: i32) -> (i32, i32) {
    %c0_i32 = arith.constant 0 : i32
    return %arg0, %arg1 : i32, i32
  }
  func.func @transform_3(%arg0: i32, %arg1: i32, %arg2: i32) -> (i32, i32, i32) {
    %c0_i32 = arith.constant 0 : i32
    %c0_i32_0 = arith.constant 0 : i32
    return %arg1, %c0_i32, %arg2 : i32, i32, i32
  }
}

</mosaic_0001>

<llo_original>
// kernel: row_norm_penalized_linear_forward_and_penalty.1
$region0: #{row_norm_penalized_linear_forward_and_penalty.1}
  #allocation0 [shape = 'u32[]', space=smem, size = 0x4, offset = 0x4, fixed_abs, tag = 'smem constant byte address 0x4 - core index']
  #allocation1 [shape = 'u32[144,128]{1,0:T(1,128)}', space=vmem, size = 0x12000, scoped, tag = 'internal scratch']
  #allocation2 [shape = 'f32[8,64]{1,0:T(8,128)}', space=vmem, size = 0x1000, scoped, tag = 'scratch operand']
  %s0 = inlined_call_operand.vmem [shape: f32[8,32], index: 0, kind: input, shape index: {}]
  %s1 = inlined_call_operand.vmem [shape: f32[64,32], index: 1, kind: input, shape index: {}]
  %s2 = inlined_call_operand.hbm [shape: f32[8,64], index: 2, kind: output, shape index: {0}]
  %s3 = inlined_call_operand.vmem [shape: f32[1,1,32], index: 3, kind: output, shape index: {1}]
  %4 = xla_tuple %s2, %s3
  %s5 = sld [smem:[#allocation0]]
  $region34: #{row_norm_penalized_linear_forward_and_penalty.1} parent=0
    _
  %s7 = ssub.s32 1, %s5
  %s8 = scalar_select 0, %s7, %s5
  $region1: #{row_norm_penalized_linear_forward_and_penalty.1} parent=0
    #allocation3 [shape = 'u8[4096]{0}', space=vmem, size = 0x1000, scoped, tag = 'output window, operand 0, single buffered']
    #allocation4 [shape = 's32[1]{0}', space=sflag, size = 0x4, scoped, tag = 'scoped memory for row_norm_penalized_linear_forward_and_penalty.1']
    %9 = vsyncpa [#allocation4], 0
    // Predicated region
    $region2: #{row_norm_penalized_linear_forward_and_penalty.1} parent=1 // pred_check
      _
    $region3: #{row_norm_penalized_linear_forward_and_penalty.1} parent=1 // pred_check_branch
      %11 = sbr.rel (0) target = $region5
    $region4: #{row_norm_penalized_linear_forward_and_penalty.1} parent=1 // pred_region
      _
    $region5: #{row_norm_penalized_linear_forward_and_penalty.1} parent=1 // pred_fallthru
      _
    // Predicated region
    $region6: #{row_norm_penalized_linear_forward_and_penalty.1} parent=1 // pred_check
      _
    $region7: #{row_norm_penalized_linear_forward_and_penalty.1} parent=1 // pred_check_branch
      %13 = sbr.rel (0) target = $region9
    $region8: #{row_norm_penalized_linear_forward_and_penalty.1} parent=1 // pred_region
      _
    $region9: #{row_norm_penalized_linear_forward_and_penalty.1} parent=1 // pred_fallthru
      _
    %p15 = scmp.eq.s32.totalorder 0, 0
    // Predicated region
    $region10: #{row_norm_penalized_linear_forward_and_penalty.1} parent=1 // pred_check
      %p16 = pneg %p15
    $region11: #{row_norm_penalized_linear_forward_and_penalty.1} parent=1 // pred_check_branch
      %18 = sbr.rel (%p16) target = $region13
    $region12: #{row_norm_penalized_linear_forward_and_penalty.1} parent=1 // pred_region
      %vm19 = vcmask 523264
      %20 = vst.msk [vmem:[#allocation2] sm:$0xff] %vm19, 0.0
    $region13: #{row_norm_penalized_linear_forward_and_penalty.1} parent=1 // pred_fallthru
      _
    %v21 = vld [vmem:[%s0] sm:$0xff]
    %v22 = vld [vmem:[%s1] sm:$0xff]
    %v23 = vld [vmem:[%s1 + $0x8] sm:$0xff]
    %v24 = vld [vmem:[%s1 + $0x10] sm:$0xff]
    %v25 = vld [vmem:[%s1 + $0x18] sm:$0xff]
    %v26 = vld [vmem:[%s1 + $0x20] sm:$0xff]
    %v27 = vld [vmem:[%s1 + $0x28] sm:$0xff]
    %v28 = vld [vmem:[%s1 + $0x30] sm:$0xff]
    %v29 = vld [vmem:[%s1 + $0x38] sm:$0xff]
    %v30 = vld [vmem:[#allocation2] sm:$0xff]
    %v31 = vpack.c.bf16 %v21, %v21
    %v32 = vpack.c.bf16 %v23, %v22
    %v33 = vpack.c.bf16 %v25, %v24
    %v34 = vpack.c.bf16 %v27, %v26
    %v35 = vpack.c.bf16 %v29, %v28
    %vm36 = vcmask 261120
    %v38 = vsel %vm36, %v31, 0
    %v41 = vsel %vm36, %v32, 0
    %v44 = vsel %vm36, %v33, 0
    %v47 = vsel %vm36, %v34, 0
    %v50 = vsel %vm36, %v35, 0
    %52 = vmatprep.subr.bf16.mxu0 0
    %53 = vmatpush1.bf16.xpose.msra.mxu0 0
    %54 = vmatprep.subr.bf16.mxu0 0
    %55 = vmatpush1.bf16.xpose.msra.mxu0 0
    %56 = vmatprep.subr.bf16.mxu0 0
    %57 = vmatpush1.bf16.xpose.msra.mxu0 0
    %58 = vmatprep.subr.bf16.mxu0 0
    %59 = vmatpush1.bf16.xpose.msra.mxu0 0
    %60 = vmatprep.subr.bf16.mxu0 0
    %61 = vmatpush1.bf16.xpose.msra.mxu0 %v50
    %62 = vmatprep.subr.bf16.mxu0 0
    %63 = vmatpush1.bf16.xpose.msra.mxu0 %v47
    %64 = vmatprep.subr.bf16.mxu0 0
    %65 = vmatpush1.bf16.xpose.msra.mxu0 %v44
    %66 = vmatprep.subr.bf16.mxu0 0
    %67 = vmatpush1.bf16.xpose.msra.mxu0 %v41
    %68 = vmatprep.subr.bf16.mxu0 0
    %69 = vmatpush2.bf16.xpose.msra.mxu0 0
    %70 = vmatprep.subr.bf16.mxu0 0
    %71 = vmatpush2.bf16.xpose.msra.mxu0 0
    %72 = vmatprep.subr.bf16.mxu0 0
    %73 = vmatpush2.bf16.xpose.msra.mxu0 0
    %74 = vmatprep.subr.bf16.mxu0 0
    %75 = vmatpush2.bf16.xpose.msra.mxu0 0
    %76 = vmatprep.subr.bf16.mxu0 0
    %77 = vmatpush2.bf16.xpose.msra.mxu0 0
    %78 = vmatprep.subr.bf16.mxu0 0
    %79 = vmatpush2.bf16.xpose.msra.mxu0 0
    %80 = vmatprep.subr.bf16.mxu0 0
    %81 = vmatpush2.bf16.xpose.msra.mxu0 0
    %82 = vmatprep.subr.bf16.mxu0 0
    %83 = vmatpush2.bf16.xpose.msra.mxu0 0
    %84 = vmatprep.mubr.bf16.mxu0 0
    %85 = vmatmul.mubr.bf16.gmra.mxu0 %v38
    %v86 = vpop.f32.mrf.mxu0
    %v87 = vadd.f32 0.0, %v86
    %v88 = vpop.f32.mrf.mxu0
    %v89 = vpop.f32.mrf.mxu0
    %v90 = vpop.f32.mrf.mxu0
    %91 = vdwg.mxu0
    %v92 = vadd.f32 %v30, %v87
    %vm93 = vcmask 523264
    %94 = vst.msk [vmem:[#allocation2] sm:$0xff] %vm93, %v92
    %v95 = vmul.f32 %v22, %v22
    %v96 = vmul.f32 %v23, %v23
    %v97 = vmul.f32 %v24, %v24
    %v98 = vmul.f32 %v25, %v25
    %v99 = vmul.f32 %v26, %v26
    %v100 = vmul.f32 %v27, %v27
    %v101 = vmul.f32 %v28, %v28
    %v102 = vmul.f32 %v29, %v29
    %v103 = vsel %vm36, %v95, 0.0
    %v104 = vsel %vm36, %v96, 0.0
    %v105 = vadd.f32 %v103, %v104
    %v106 = vsel %vm36, %v97, 0.0
    %v107 = vadd.f32 %v105, %v106
    %v108 = vsel %vm36, %v98, 0.0
    %v109 = vadd.f32 %v107, %v108
    %v110 = vsel %vm36, %v99, 0.0
    %v111 = vadd.f32 %v109, %v110
    %v112 = vsel %vm36, %v100, 0.0
    %v113 = vadd.f32 %v111, %v112
    %v114 = vsel %vm36, %v101, 0.0
    %v115 = vadd.f32 %v113, %v114
    %v116 = vsel %vm36, %v102, 0.0
    %v117 = vadd.f32 %v115, %v116
    %v118 = vrot.slane %v117, 4
    %v119 = vadd.f32 %v117, %v118
    %v120 = vrot.slane %v119, 2
    %v121 = vadd.f32 %v119, %v120
    %v122 = vrot.slane %v121, 1
    %v123 = vadd.f32 %v121, %v122
    %vm124 = vcmask 253952
    %125 = vst.msk [vmem:[%s3] sm:$0x1] %vm124, %v123
    // Predicated region
    $region14: #{row_norm_penalized_linear_forward_and_penalty.1} parent=1 // pred_check
      %p126 = pneg %p15
    $region15: #{row_norm_penalized_linear_forward_and_penalty.1} parent=1 // pred_check_branch
      %128 = sbr.rel (%p126) target = $region17
    $region16: #{row_norm_penalized_linear_forward_and_penalty.1} parent=1 // pred_region
      %v129 = vld [vmem:[#allocation2] sm:$0xff]
      %130 = vst.msk [vmem:[#allocation3] sm:$0xff] %vm93, %v129
    $region17: #{row_norm_penalized_linear_forward_and_penalty.1} parent=1 // pred_fallthru
      _
    // Predicated region
    $region18: #{row_norm_penalized_linear_forward_and_penalty.1} parent=1 // pred_check
      _
    $region19: #{row_norm_penalized_linear_forward_and_penalty.1} parent=1 // pred_check_branch
      %132 = sbr.rel (0) target = $region21
    $region20: #{row_norm_penalized_linear_forward_and_penalty.1} parent=1 // pred_region
      %s134 = ssub.s32 128, 128
      %135 = vsyncadd [#allocation4], %s134
      %s137 = sshll.u32 [#allocation3], 4
      %s138 = int_to_ptr.vmem [resolvable:$true] %s137
      %140 = dma.vmem_to_hbm [thread:$0]  %s138, 128, %s2, [#allocation4]
    $region21: #{row_norm_penalized_linear_forward_and_penalty.1} parent=1 // pred_fallthru
      _
    // Predicated region
    $region22: #{row_norm_penalized_linear_forward_and_penalty.1} parent=1 // pred_check
      _
    $region23: #{row_norm_penalized_linear_forward_and_penalty.1} parent=1 // pred_check_branch
      %142 = sbr.rel (0) target = $region25
    $region24: #{row_norm_penalized_linear_forward_and_penalty.1} parent=1 // pred_region
      _
    $region25: #{row_norm_penalized_linear_forward_and_penalty.1} parent=1 // pred_fallthru
      _
    // Predicated region
    $region26: #{row_norm_penalized_linear_forward_and_penalty.1} parent=1 // pred_check
      _
    $region27: #{row_norm_penalized_linear_forward_and_penalty.1} parent=1 // pred_check_branch
      %144 = sbr.rel (0) target = $region29
    $region28: #{row_norm_penalized_linear_forward_and_penalty.1} parent=1 // pred_region
      %145 = dma.done [#allocation4], 128
    $region29: #{row_norm_penalized_linear_forward_and_penalty.1} parent=1 // pred_fallthru
      _
    // Predicated region
    $region30: #{row_norm_penalized_linear_forward_and_penalty.1} parent=1 // pred_check
      _
    $region31: #{row_norm_penalized_linear_forward_and_penalty.1} parent=1 // pred_check_branch
      %147 = sbr.rel (0) target = $region33
    $region32: #{row_norm_penalized_linear_forward_and_penalty.1} parent=1 // pred_region
      _
    $region33: #{row_norm_penalized_linear_forward_and_penalty.1} parent=1 // pred_fallthru
      _
    %148 = vsyncpa [#allocation4], 1

</llo_original>
